<compile_context>
chip_gen: v5e
topology: v5e:2x2
jax: 0.10.0
libtpu: 0.0.40
codegen_flags: <defaults>
</compile_context>

<pallas_src>
import functools

import jax
import jax.numpy as jnp
from jax.experimental import pallas as pl
from jax.experimental.pallas import tpu as pltpu


def _pad_up(v, m):
    return ((v + m - 1) // m) * m


def _pick_batch_tile(n):
    """Largest lane tile (fewer grid steps) with <=~25% tail-padding overshoot."""
    n128 = _pad_up(max(n, 1), 128)
    for tm in (2048, 1024, 512, 256):
        n_pad = _pad_up(n128, tm)
        if n_pad - n128 <= max(n128 // 4, 0):
            return tm, n_pad
    return 128, n128


def _fused_mlp_kernel(x_ref, w_ref, b_ref, o_ref, h0_ref, *, nl, fin, fout):
    """Push one (*, tm) batch tile through all nl fused linear+act layers.

    Transposed layout: features on sublanes, batch on lanes.
      x_ref : (fin, tm)    narrow input tile (f32)
      w_ref : (nl, F, F)   padded weights, layer i holds W_i in [:fout_i, :fin_i]
      b_ref : (nl, F, 1)   padded biases (broadcast across lanes)
      o_ref : (fout, tm)   narrow sigmoid output tile
      h0_ref: (F, tm)      VMEM scratch used to fold the feature zero-padding
                           into the kernel (never touches HBM)
    """
    # Zero-pad the activation's feature rows once, inside the kernel.
    h0_ref[...] = jnp.zeros_like(h0_ref)
    h0_ref[:fin, :] = x_ref[...]
    h = h0_ref[...]                              # (F, tm)

    for i in range(nl):  # static unroll: nl is a Python int at trace time
        # MXU matmul; cast h to the weight dtype so an optional bf16 weight
        # stack gets a native-rate bf16 matmul (f32 by default => no-op cast).
        y = jnp.dot(w_ref[i], h.astype(w_ref.dtype),
                    preferred_element_type=jnp.float32)
        y = y + b_ref[i]                         # (F, 1) broadcasts over lanes
        if i == nl - 1:
            # exp -> EUP; exact divide kept (1e-5 tolerance). exp overflow for
            # very negative y yields the correct 0.0 limit.
            h = 1.0 / (1.0 + jnp.exp(-y))
        else:
            h = jnp.maximum(y, 0.0)

    # Padded rows of the last layer are never written: store only the real ones.
    o_ref[...] = h[:fout, :].astype(o_ref.dtype)


def prepare_params(params, matmul_dtype=jnp.float32):
    """One-time padding: torch-layout (out, in) weights -> stacked padded arrays.

    Returns (w_stack, b_stack, out_dim) with
      w_stack: (nl, F, F) matmul_dtype, layer i holds W_i (NOT transposed)
               in [:fout_i, :fin_i]
      b_stack: (nl, F, 1) f32
    F = max feature dim padded up to a multiple of 128.  Pass
    matmul_dtype=jnp.bfloat16 on v5e for native-rate MXU (relax tolerances).
    """
    nl = len(params)
    dims = [params[0][0].shape[1]] + [w.shape[0] for (w, _) in params]
    F = _pad_up(max(dims), 128)
    w_stack = jnp.zeros((nl, F, F), matmul_dtype)
    b_stack = jnp.zeros((nl, F, 1), jnp.float32)
    for i, (w, b) in enumerate(params):
        fout, fin = w.shape
        w_stack = w_stack.at[i, :fout, :fin].set(w.astype(matmul_dtype))
        b_stack = b_stack.at[i, :fout, 0].set(b.astype(jnp.float32))
    return w_stack, b_stack, params[-1][0].shape[0]


@functools.partial(jax.jit, static_argnames=("out_dim",))
def model2_forward(x, w_stack, b_stack, out_dim):
    """Fused Pallas forward matching Model2.forward.

    x: (N, 2) float32. w_stack/b_stack from prepare_params. Returns (N, 3).
    """
    nl, F, _ = w_stack.shape
    n, fin = x.shape
    tm, n_pad = _pick_batch_tile(n)

    # Narrow, lane-dense input: (fin, n_pad) — features on sublanes, batch on
    # lanes.  Only ~8 B per row of HBM traffic (padding here is on a 2-row
    # array, i.e. negligible vs the old (n_pad, 128) pad pass).
    xt = jnp.zeros((fin, n_pad), jnp.float32).at[:, :n].set(
        x.astype(jnp.float32).T
    )

    yt = pl.pallas_call(
        functools.partial(_fused_mlp_kernel, nl=nl, fin=fin, fout=out_dim),
        out_shape=jax.ShapeDtypeStruct((out_dim, n_pad), jnp.float32),
        grid_spec=pltpu.PrefetchScalarGridSpec(
            num_scalar_prefetch=0,
            grid=(n_pad // tm,),
            in_specs=[
                # (fin, tm): first dim = full array extent, last dim lane-dense.
                pl.BlockSpec((fin, tm), lambda i: (0, i)),
                # VMEM-resident weight/bias stacks (constant index map =>
                # fetched once, reused across all grid steps).
                pl.BlockSpec((nl, F, F), lambda i: (0, 0, 0)),
                pl.BlockSpec((nl, F, 1), lambda i: (0, 0, 0)),
            ],
            out_specs=pl.BlockSpec((out_dim, tm), lambda i: (0, i)),
            scratch_shapes=[pltpu.VMEM((F, tm), jnp.float32)],
        ),
        compiler_params=pltpu.CompilerParams(
            dimension_semantics=("parallel",),
            vmem_limit_bytes=32 * 1024 * 1024,
        ),
    )(xt, w_stack, b_stack)

    # Narrow slice/transpose back to the torch (N, 3) convention.
    return yt[:, :n].T


def model2_reference(x, params):
    """Pure-JAX reference (mirrors the PyTorch forward)."""
    nl = len(params)
    h = x.astype(jnp.float32)
    for i, (w, b) in enumerate(params):
        h = h @ w.T.astype(jnp.float32) + b.astype(jnp.float32)
        if i == nl - 1:
            h = jax.nn.sigmoid(h)
        else:
            h = jax.nn.relu(h)
    return h


def init_params(key, nl, nf):
    """Deterministic init matching torch.nn.Linear shapes: w (out, in), b (out,)."""
    params = []
    for i in range(nl):
        n1 = 2 if i == 0 else nf
        n2 = 3 if i == nl - 1 else nf
        key, kw, kb = jax.random.split(key, 3)
        bound = 1.0 / jnp.sqrt(jnp.float32(n1))
        w = jax.random.uniform(kw, (n2, n1), jnp.float32, -bound, bound)
        b = jax.random.uniform(kb, (n2,), jnp.float32, -bound, bound)
        params.append((w, b))
    return params


if __name__ == "__main__":
    nl, nf = 3, 32
    batch = 8

    key = jax.random.PRNGKey(0)
    key, kx, kx2 = jax.random.split(key, 3)
    x = jax.random.normal(kx, (batch, 2), jnp.float32)
    params = init_params(key, nl, nf)

    # One-time weight padding / stacking (hoisted out of the forward).
    w_stack, b_stack, out_dim = prepare_params(params)

    out = jax.block_until_ready(model2_forward(x, w_stack, b_stack, out_dim))
    ref = jax.block_until_ready(model2_reference(x, params))
    assert out.shape == (batch, 3), out.shape
    assert jnp.allclose(out, ref, atol=1e-5, rtol=1e-5), "mismatch vs reference"

    # Second check: awkward batch size exercising multi-step grid + tail padding.
    x2 = jax.random.normal(kx2, (300, 2), jnp.float32)
    out2 = jax.block_until_ready(model2_forward(x2, w_stack, b_stack, out_dim))
    ref2 = jax.block_until_ready(model2_reference(x2, params))
    assert out2.shape == (300, 3), out2.shape
    assert jnp.allclose(out2, ref2, atol=1e-5, rtol=1e-5), "mismatch (N=300)"

    print("KERNEL_OK")
</pallas_src>

<mosaic_0001>
module attributes {stable_mosaic.version = 11 : i64} {
  func.func @_fused_mlp_kernel(%arg0: i32, %arg1: memref<2x128xf32, #tpu.memory_space<vmem>>, %arg2: memref<3x128x128xf32, #tpu.memory_space<vmem>>, %arg3: memref<3x128x1xf32, #tpu.memory_space<vmem>>, %arg4: memref<3x128xf32, #tpu.memory_space<vmem>>, %arg5: memref<128x128xf32, #tpu.memory_space<vmem>>) attributes {dimension_semantics = [#tpu.dimension_semantics<parallel>], iteration_bounds = array<i64: 1>, scalar_prefetch = 0 : i64, scratch_operands = 1 : i64, tpu.core_type = #tpu.core_type<tc>, window_params = [{transform_indices = @transform_0, window_bounds = array<i64: 2, 128>}, {pipeline_mode = #tpu.pipeline_mode<synchronous>, transform_indices = @transform_1, window_bounds = array<i64: 3, 128, 128>}, {pipeline_mode = #tpu.pipeline_mode<synchronous>, transform_indices = @transform_2, window_bounds = array<i64: 3, 128, 1>}, {transform_indices = @transform_3, window_bounds = array<i64: 3, 128>}]} {
    %cst = arith.constant 0.000000e+00 : f32
    %0 = vector.broadcast %cst : f32 to vector<128x128xf32>
    %c0 = arith.constant 0 : index
    %c0_0 = arith.constant 0 : index
    %1 = vector.load %arg5[%c0, %c0_0] : memref<128x128xf32, #tpu.memory_space<vmem>>, vector<128x128xf32>
    tpu.vector_store %arg5[%c0, %c0_0], %0 {strides = array<i32>} : memref<128x128xf32, #tpu.memory_space<vmem>>, vector<128x128xf32>,
    %c0_1 = arith.constant 0 : index
    %c0_2 = arith.constant 0 : index
    %2 = vector.load %arg1[%c0_1, %c0_2] : memref<2x128xf32, #tpu.memory_space<vmem>>, vector<2x128xf32>
    %c0_3 = arith.constant 0 : index
    %c0_4 = arith.constant 0 : index
    %3 = vector.load %arg5[%c0_3, %c0_4] : memref<128x128xf32, #tpu.memory_space<vmem>>, vector<2x128xf32>
    tpu.vector_store %arg5[%c0_3, %c0_4], %2 {strides = array<i32>} : memref<128x128xf32, #tpu.memory_space<vmem>>, vector<2x128xf32>,
    %c0_5 = arith.constant 0 : index
    %c0_6 = arith.constant 0 : index
    %4 = vector.load %arg5[%c0_5, %c0_6] : memref<128x128xf32, #tpu.memory_space<vmem>>, vector<128x128xf32>
    %c0_7 = arith.constant 0 : index
    %c0_8 = arith.constant 0 : index
    %c0_9 = arith.constant 0 : index
    %5 = vector.load %arg2[%c0_7, %c0_8, %c0_9] : memref<3x128x128xf32, #tpu.memory_space<vmem>>, vector<1x128x128xf32>
    %6 = vector.shape_cast %5 : vector<1x128x128xf32> to vector<128x128xf32>
    %cst_10 = arith.constant dense<0.000000e+00> : vector<128x128xf32>
    %7 = tpu.matmul %6, %4, %cst_10 {dimension_numbers = #tpu.dot_dimension_numbers<[1], [0], [0], [1], [0, 0, 1, 1], [], []>} : vector<128x128xf32>, vector<128x128xf32>, vector<128x128xf32> -> vector<128x128xf32>
    %c0_11 = arith.constant 0 : index
    %c0_12 = arith.constant 0 : index
    %c0_13 = arith.constant 0 : index
    %8 = vector.load %arg3[%c0_11, %c0_12, %c0_13] : memref<3x128x1xf32, #tpu.memory_space<vmem>>, vector<1x128x1xf32>
    %9 = vector.shape_cast %8 : vector<1x128x1xf32> to vector<128x1xf32>
    %10 = vector.broadcast %9 : vector<128x1xf32> to vector<128x128xf32>
    %11 = arith.addf %7, %10 : vector<128x128xf32>
    %cst_14 = arith.constant 0.000000e+00 : f32
    %12 = vector.broadcast %cst_14 : f32 to vector<128x128xf32>
    %13 = arith.maximumf %11, %12 : vector<128x128xf32>
    %c1 = arith.constant 1 : index
    %c0_15 = arith.constant 0 : index
    %c0_16 = arith.constant 0 : index
    %14 = vector.load %arg2[%c1, %c0_15, %c0_16] : memref<3x128x128xf32, #tpu.memory_space<vmem>>, vector<1x128x128xf32>
    %15 = vector.shape_cast %14 : vector<1x128x128xf32> to vector<128x128xf32>
    %cst_17 = arith.constant dense<0.000000e+00> : vector<128x128xf32>
    %16 = tpu.matmul %15, %13, %cst_17 {dimension_numbers = #tpu.dot_dimension_numbers<[1], [0], [0], [1], [0, 0, 1, 1], [], []>} : vector<128x128xf32>, vector<128x128xf32>, vector<128x128xf32> -> vector<128x128xf32>
    %c1_18 = arith.constant 1 : index
    %c0_19 = arith.constant 0 : index
    %c0_20 = arith.constant 0 : index
    %17 = vector.load %arg3[%c1_18, %c0_19, %c0_20] : memref<3x128x1xf32, #tpu.memory_space<vmem>>, vector<1x128x1xf32>
    %18 = vector.shape_cast %17 : vector<1x128x1xf32> to vector<128x1xf32>
    %19 = vector.broadcast %18 : vector<128x1xf32> to vector<128x128xf32>
    %20 = arith.addf %16, %19 : vector<128x128xf32>
    %cst_21 = arith.constant 0.000000e+00 : f32
    %21 = vector.broadcast %cst_21 : f32 to vector<128x128xf32>
    %22 = arith.maximumf %20, %21 : vector<128x128xf32>
    %c2 = arith.constant 2 : index
    %c0_22 = arith.constant 0 : index
    %c0_23 = arith.constant 0 : index
    %23 = vector.load %arg2[%c2, %c0_22, %c0_23] : memref<3x128x128xf32, #tpu.memory_space<vmem>>, vector<1x128x128xf32>
    %24 = vector.shape_cast %23 : vector<1x128x128xf32> to vector<128x128xf32>
    %cst_24 = arith.constant dense<0.000000e+00> : vector<128x128xf32>
    %25 = tpu.matmul %24, %22, %cst_24 {dimension_numbers = #tpu.dot_dimension_numbers<[1], [0], [0], [1], [0, 0, 1, 1], [], []>} : vector<128x128xf32>, vector<128x128xf32>, vector<128x128xf32> -> vector<128x128xf32>
    %c2_25 = arith.constant 2 : index
    %c0_26 = arith.constant 0 : index
    %c0_27 = arith.constant 0 : index
    %26 = vector.load %arg3[%c2_25, %c0_26, %c0_27] : memref<3x128x1xf32, #tpu.memory_space<vmem>>, vector<1x128x1xf32>
    %27 = vector.shape_cast %26 : vector<1x128x1xf32> to vector<128x1xf32>
    %28 = vector.broadcast %27 : vector<128x1xf32> to vector<128x128xf32>
    %29 = arith.addf %25, %28 : vector<128x128xf32>
    %cst_28 = arith.constant 0.000000e+00 : f32
    %30 = vector.broadcast %cst_28 : f32 to vector<128x128xf32>
    %31 = arith.subf %30, %29 : vector<128x128xf32>
    %32 = math.exp %31 : vector<128x128xf32>
    %cst_29 = arith.constant 1.000000e+00 : f32
    %33 = vector.broadcast %cst_29 : f32 to vector<128x128xf32>
    %34 = arith.addf %33, %32 : vector<128x128xf32>
    %cst_30 = arith.constant 1.000000e+00 : f32
    %35 = vector.broadcast %cst_30 : f32 to vector<128x128xf32>
    %36 = arith.divf %35, %34 : vector<128x128xf32>
    %37 = vector.extract_strided_slice %36 {offsets = [0, 0], sizes = [3, 128], strides = [1, 1]} : vector<128x128xf32> to vector<3x128xf32>
    %c0_31 = arith.constant 0 : index
    %c0_32 = arith.constant 0 : index
    %38 = vector.load %arg4[%c0_31, %c0_32] : memref<3x128xf32, #tpu.memory_space<vmem>>, vector<3x128xf32>
    tpu.vector_store %arg4[%c0_31, %c0_32], %37 {strides = array<i32>} : memref<3x128xf32, #tpu.memory_space<vmem>>, vector<3x128xf32>,
    return
  }
  func.func @transform_0(%arg0: i32) -> (i32, i32) {
    %c0_i32 = arith.constant 0 : i32
    %c0_i32_0 = arith.constant 0 : i32
    return %c0_i32, %arg0 : i32, i32
  }
  func.func @transform_1(%arg0: i32) -> (i32, i32, i32) {
    %c0_i32 = arith.constant 0 : i32
    %c0_i32_0 = arith.constant 0 : i32
    %c0_i32_1 = arith.constant 0 : i32
    %c0_i32_2 = arith.constant 0 : i32
    return %c0_i32, %c0_i32_0, %c0_i32_1 : i32, i32, i32
  }
  func.func @transform_2(%arg0: i32) -> (i32, i32, i32) {
    %c0_i32 = arith.constant 0 : i32
    %c0_i32_0 = arith.constant 0 : i32
    %c0_i32_1 = arith.constant 0 : i32
    %c0_i32_2 = arith.constant 0 : i32
    return %c0_i32, %c0_i32_0, %c0_i32_1 : i32, i32, i32
  }
  func.func @transform_3(%arg0: i32) -> (i32, i32) {
    %c0_i32 = arith.constant 0 : i32
    %c0_i32_0 = arith.constant 0 : i32
    return %c0_i32, %arg0 : i32, i32
  }
}

</mosaic_0001>

<llo_original>
// kernel: model2_forward.1
$region0: #{model2_forward.1}
  #allocation0 [shape = 'u32[]', space=smem, size = 0x4, offset = 0x4, fixed_abs, tag = 'smem constant byte address 0x4 - core index']
  #allocation1 [shape = 'u32[72,128]{1,0:T(1,128)}', space=vmem, size = 0x9000, scoped, tag = 'internal scratch']
  #allocation2 [shape = 'f32[128,128]{1,0:T(8,128)}', space=vmem, size = 0x10000, scoped, tag = 'scratch operand']
  %s0 = inlined_call_operand.vmem [shape: f32[2,128], index: 0, kind: input, shape index: {}]
  %s1 = inlined_call_operand.vmem [shape: f32[3,128,128], index: 1, kind: input, shape index: {}]
  %s2 = inlined_call_operand.vmem [shape: f32[3,128,1], index: 2, kind: input, shape index: {}]
  %s3 = inlined_call_operand.vmem [shape: f32[3,128], index: 3, kind: output, shape index: {}]
  %s4 = sld [smem:[#allocation0]]
  $region22: #{model2_forward.1} parent=0
    _
  %s6 = ssub.s32 1, %s4
  %s7 = scalar_select 0, %s6, %s4
  // Predicated region
  $region2: #{model2_forward.1} parent=0 // pred_check
    _
  $region3: #{model2_forward.1} parent=0 // pred_check_branch
    %9 = sbr.rel (0) target = $region5
  $region4: #{model2_forward.1} parent=0 // pred_region
    _
  $region5: #{model2_forward.1} parent=0 // pred_fallthru
    _
  // Predicated region
  $region6: #{model2_forward.1} parent=0 // pred_check
    _
  $region7: #{model2_forward.1} parent=0 // pred_check_branch
    %11 = sbr.rel (0) target = $region9
  $region8: #{model2_forward.1} parent=0 // pred_region
    _
  $region9: #{model2_forward.1} parent=0 // pred_fallthru
    _
  // Predicated region
  $region10: #{model2_forward.1} parent=0 // pred_check
    _
  $region11: #{model2_forward.1} parent=0 // pred_check_branch
    %13 = sbr.rel (0) target = $region13
  $region12: #{model2_forward.1} parent=0 // pred_region
    _
  $region13: #{model2_forward.1} parent=0 // pred_fallthru
    _
  %14 = vst [vmem:[#allocation2] sm:$0xff] 0.0
  %15 = vst [vmem:[#allocation2 + $0x8] sm:$0xff] 0.0
  %16 = vst [vmem:[#allocation2 + $0x10] sm:$0xff] 0.0
  %17 = vst [vmem:[#allocation2 + $0x18] sm:$0xff] 0.0
  %18 = vst [vmem:[#allocation2 + $0x20] sm:$0xff] 0.0
  %19 = vst [vmem:[#allocation2 + $0x28] sm:$0xff] 0.0
  %20 = vst [vmem:[#allocation2 + $0x30] sm:$0xff] 0.0
  %21 = vst [vmem:[#allocation2 + $0x38] sm:$0xff] 0.0
  %22 = vst [vmem:[#allocation2 + $0x40] sm:$0xff] 0.0
  %23 = vst [vmem:[#allocation2 + $0x48] sm:$0xff] 0.0
  %24 = vst [vmem:[#allocation2 + $0x50] sm:$0xff] 0.0
  %25 = vst [vmem:[#allocation2 + $0x58] sm:$0xff] 0.0
  %26 = vst [vmem:[#allocation2 + $0x60] sm:$0xff] 0.0
  %27 = vst [vmem:[#allocation2 + $0x68] sm:$0xff] 0.0
  %28 = vst [vmem:[#allocation2 + $0x70] sm:$0xff] 0.0
  %29 = vst [vmem:[#allocation2 + $0x78] sm:$0xff] 0.0
  %v30 = vld [vmem:[%s0] sm:$0x3]
  %31 = vst [vmem:[#allocation2] sm:$0x3] %v30
  %v32 = vld [vmem:[#allocation2] sm:$0xff]
  %v33 = vld [vmem:[#allocation2 + $0x8] sm:$0xff]
  %v34 = vld [vmem:[#allocation2 + $0x10] sm:$0xff]
  %v35 = vld [vmem:[#allocation2 + $0x18] sm:$0xff]
  %v36 = vld [vmem:[#allocation2 + $0x20] sm:$0xff]
  %v37 = vld [vmem:[#allocation2 + $0x28] sm:$0xff]
  %v38 = vld [vmem:[#allocation2 + $0x30] sm:$0xff]
  %v39 = vld [vmem:[#allocation2 + $0x38] sm:$0xff]
  %v40 = vld [vmem:[#allocation2 + $0x40] sm:$0xff]
  %v41 = vld [vmem:[#allocation2 + $0x48] sm:$0xff]
  %v42 = vld [vmem:[#allocation2 + $0x50] sm:$0xff]
  %v43 = vld [vmem:[#allocation2 + $0x58] sm:$0xff]
  %v44 = vld [vmem:[#allocation2 + $0x60] sm:$0xff]
  %v45 = vld [vmem:[#allocation2 + $0x68] sm:$0xff]
  %v46 = vld [vmem:[#allocation2 + $0x70] sm:$0xff]
  %v47 = vld [vmem:[#allocation2 + $0x78] sm:$0xff]
  %v48 = vld [vmem:[%s1] sm:$0xff]
  %v49 = vld [vmem:[%s1 + $0x8] sm:$0xff]
  %v50 = vld [vmem:[%s1 + $0x10] sm:$0xff]
  %v51 = vld [vmem:[%s1 + $0x18] sm:$0xff]
  %v52 = vld [vmem:[%s1 + $0x20] sm:$0xff]
  %v53 = vld [vmem:[%s1 + $0x28] sm:$0xff]
  %v54 = vld [vmem:[%s1 + $0x30] sm:$0xff]
  %v55 = vld [vmem:[%s1 + $0x38] sm:$0xff]
  %v56 = vld [vmem:[%s1 + $0x40] sm:$0xff]
  %v57 = vld [vmem:[%s1 + $0x48] sm:$0xff]
  %v58 = vld [vmem:[%s1 + $0x50] sm:$0xff]
  %v59 = vld [vmem:[%s1 + $0x58] sm:$0xff]
  %v60 = vld [vmem:[%s1 + $0x60] sm:$0xff]
  %v61 = vld [vmem:[%s1 + $0x68] sm:$0xff]
  %v62 = vld [vmem:[%s1 + $0x70] sm:$0xff]
  %v63 = vld [vmem:[%s1 + $0x78] sm:$0xff]
  %v64 = vld [vmem:[%s2] sm:$0xff]
  %v65 = vld [vmem:[%s2 + $0x8] sm:$0xff]
  %v66 = vld [vmem:[%s2 + $0x10] sm:$0xff]
  %v67 = vld [vmem:[%s2 + $0x18] sm:$0xff]
  %v68 = vld [vmem:[%s2 + $0x20] sm:$0xff]
  %v69 = vld [vmem:[%s2 + $0x28] sm:$0xff]
  %v70 = vld [vmem:[%s2 + $0x30] sm:$0xff]
  %v71 = vld [vmem:[%s2 + $0x38] sm:$0xff]
  %v72 = vld [vmem:[%s2 + $0x40] sm:$0xff]
  %v73 = vld [vmem:[%s2 + $0x48] sm:$0xff]
  %v74 = vld [vmem:[%s2 + $0x50] sm:$0xff]
  %v75 = vld [vmem:[%s2 + $0x58] sm:$0xff]
  %v76 = vld [vmem:[%s2 + $0x60] sm:$0xff]
  %v77 = vld [vmem:[%s2 + $0x68] sm:$0xff]
  %v78 = vld [vmem:[%s2 + $0x70] sm:$0xff]
  %v79 = vld [vmem:[%s2 + $0x78] sm:$0xff]
  %81 = vset.pattern.permute.xlu0 0
  %82 = vperm.xlu0 %81, %v64
  %v83 = vpop.permute.xlu0 %82
  %86 = vset.pattern.permute.xlu0 0
  %87 = vperm.xlu0 %86, %v65
  %v88 = vpop.permute.xlu0 %87
  %91 = vset.pattern.permute.xlu0 0
  %92 = vperm.xlu0 %91, %v66
  %v93 = vpop.permute.xlu0 %92
  %96 = vset.pattern.permute.xlu0 0
  %97 = vperm.xlu0 %96, %v67
  %v98 = vpop.permute.xlu0 %97
  %101 = vset.pattern.permute.xlu0 0
  %102 = vperm.xlu0 %101, %v68
  %v103 = vpop.permute.xlu0 %102
  %106 = vset.pattern.permute.xlu0 0
  %107 = vperm.xlu0 %106, %v69
  %v108 = vpop.permute.xlu0 %107
  %111 = vset.pattern.permute.xlu0 0
  %112 = vperm.xlu0 %111, %v70
  %v113 = vpop.permute.xlu0 %112
  %116 = vset.pattern.permute.xlu0 0
  %117 = vperm.xlu0 %116, %v71
  %v118 = vpop.permute.xlu0 %117
  %121 = vset.pattern.permute.xlu0 0
  %122 = vperm.xlu0 %121, %v72
  %v123 = vpop.permute.xlu0 %122
  %126 = vset.pattern.permute.xlu0 0
  %127 = vperm.xlu0 %126, %v73
  %v128 = vpop.permute.xlu0 %127
  %131 = vset.pattern.permute.xlu0 0
  %132 = vperm.xlu0 %131, %v74
  %v133 = vpop.permute.xlu0 %132
  %136 = vset.pattern.permute.xlu0 0
  %137 = vperm.xlu0 %136, %v75
  %v138 = vpop.permute.xlu0 %137
  %141 = vset.pattern.permute.xlu0 0
  %142 = vperm.xlu0 %141, %v76
  %v143 = vpop.permute.xlu0 %142
  %146 = vset.pattern.permute.xlu0 0
  %147 = vperm.xlu0 %146, %v77
  %v148 = vpop.permute.xlu0 %147
  %151 = vset.pattern.permute.xlu0 0
  %152 = vperm.xlu0 %151, %v78
  %v153 = vpop.permute.xlu0 %152
  %156 = vset.pattern.permute.xlu0 0
  %157 = vperm.xlu0 %156, %v79
  %v158 = vpop.permute.xlu0 %157
  %160 = vmatpush.msra.mxu0 %v47
  %161 = vmatpush.msra.mxu0 %v46
  %162 = vmatpush.msra.mxu0 %v45
  %163 = vmatpush.msra.mxu0 %v44
  %164 = vmatpush.msra.mxu0 %v43
  %165 = vmatpush.msra.mxu0 %v42
  %166 = vmatpush.msra.mxu0 %v41
  %167 = vmatpush.msra.mxu0 %v40
  %168 = vmatpush.msra.mxu0 %v39
  %169 = vmatpush.msra.mxu0 %v38
  %170 = vmatpush.msra.mxu0 %v37
  %171 = vmatpush.msra.mxu0 %v36
  %172 = vmatpush.msra.mxu0 %v35
  %173 = vmatpush.msra.mxu0 %v34
  %174 = vmatpush.msra.mxu0 %v33
  %175 = vmatpush.msra.mxu0 %v32
  %176 = vmatmul.f32.gmra.mxu0 %v48
  %v177 = vpop.f32.mrf.mxu0
  %v178 = vadd.f32 %v83, %v177
  %179 = vmatmul.f32.gmra.mxu0 %v49
  %v180 = vpop.f32.mrf.mxu0
  %v181 = vadd.f32 %v88, %v180
  %182 = vmatmul.f32.gmra.mxu0 %v50
  %v183 = vpop.f32.mrf.mxu0
  %v184 = vadd.f32 %v93, %v183
  %185 = vmatmul.f32.gmra.mxu0 %v51
  %v186 = vpop.f32.mrf.mxu0
  %v187 = vadd.f32 %v98, %v186
  %188 = vmatmul.f32.gmra.mxu0 %v52
  %v189 = vpop.f32.mrf.mxu0
  %v190 = vadd.f32 %v103, %v189
  %191 = vmatmul.f32.gmra.mxu0 %v53
  %v192 = vpop.f32.mrf.mxu0
  %v193 = vadd.f32 %v108, %v192
  %194 = vmatmul.f32.gmra.mxu0 %v54
  %v195 = vpop.f32.mrf.mxu0
  %v196 = vadd.f32 %v113, %v195
  %197 = vmatmul.f32.gmra.mxu0 %v55
  %v198 = vpop.f32.mrf.mxu0
  %v199 = vadd.f32 %v118, %v198
  %200 = vmatmul.f32.gmra.mxu0 %v56
  %v201 = vpop.f32.mrf.mxu0
  %v202 = vadd.f32 %v123, %v201
  %203 = vmatmul.f32.gmra.mxu0 %v57
  %v204 = vpop.f32.mrf.mxu0
  %v205 = vadd.f32 %v128, %v204
  %206 = vmatmul.f32.gmra.mxu0 %v58
  %v207 = vpop.f32.mrf.mxu0
  %v208 = vadd.f32 %v133, %v207
  %209 = vmatmul.f32.gmra.mxu0 %v59
  %v210 = vpop.f32.mrf.mxu0
  %v211 = vadd.f32 %v138, %v210
  %212 = vmatmul.f32.gmra.mxu0 %v60
  %v213 = vpop.f32.mrf.mxu0
  %v214 = vadd.f32 %v143, %v213
  %215 = vmatmul.f32.gmra.mxu0 %v61
  %v216 = vpop.f32.mrf.mxu0
  %v217 = vadd.f32 %v148, %v216
  %218 = vmatmul.f32.gmra.mxu0 %v62
  %v219 = vpop.f32.mrf.mxu0
  %v220 = vadd.f32 %v153, %v219
  %221 = vmatmul.f32.gmra.mxu0 %v63
  %v222 = vpop.f32.mrf.mxu0
  %v223 = vadd.f32 %v158, %v222
  %224 = vdwg.mxu0
  %v225 = vmax.f32 %v178, 0.0
  %v226 = vmax.f32 %v181, 0.0
  %v227 = vmax.f32 %v184, 0.0
  %v228 = vmax.f32 %v187, 0.0
  %v229 = vmax.f32 %v190, 0.0
  %v230 = vmax.f32 %v193, 0.0
  %v231 = vmax.f32 %v196, 0.0
  %v232 = vmax.f32 %v199, 0.0
  %v233 = vmax.f32 %v202, 0.0
  %v234 = vmax.f32 %v205, 0.0
  %v235 = vmax.f32 %v208, 0.0
  %v236 = vmax.f32 %v211, 0.0
  %v237 = vmax.f32 %v214, 0.0
  %v238 = vmax.f32 %v217, 0.0
  %v239 = vmax.f32 %v220, 0.0
  %v240 = vmax.f32 %v223, 0.0
  %s241 = scalar_lea.vmem %s1, 128
  %v242 = vld [vmem:[%s241] sm:$0xff]
  %v243 = vld [vmem:[%s241 + $0x8] sm:$0xff]
  %v244 = vld [vmem:[%s241 + $0x10] sm:$0xff]
  %v245 = vld [vmem:[%s241 + $0x18] sm:$0xff]
  %v246 = vld [vmem:[%s241 + $0x20] sm:$0xff]
  %v247 = vld [vmem:[%s241 + $0x28] sm:$0xff]
  %v248 = vld [vmem:[%s241 + $0x30] sm:$0xff]
  %v249 = vld [vmem:[%s241 + $0x38] sm:$0xff]
  %v250 = vld [vmem:[%s241 + $0x40] sm:$0xff]
  %v251 = vld [vmem:[%s241 + $0x48] sm:$0xff]
  %v252 = vld [vmem:[%s241 + $0x50] sm:$0xff]
  %v253 = vld [vmem:[%s241 + $0x58] sm:$0xff]
  %v254 = vld [vmem:[%s241 + $0x60] sm:$0xff]
  %v255 = vld [vmem:[%s241 + $0x68] sm:$0xff]
  %v256 = vld [vmem:[%s241 + $0x70] sm:$0xff]
  %v257 = vld [vmem:[%s241 + $0x78] sm:$0xff]
  %s258 = scalar_lea.vmem %s2, 128
  %v259 = vld [vmem:[%s258] sm:$0xff]
  %v260 = vld [vmem:[%s258 + $0x8] sm:$0xff]
  %v261 = vld [vmem:[%s258 + $0x10] sm:$0xff]
  %v262 = vld [vmem:[%s258 + $0x18] sm:$0xff]
  %v263 = vld [vmem:[%s258 + $0x20] sm:$0xff]
  %v264 = vld [vmem:[%s258 + $0x28] sm:$0xff]
  %v265 = vld [vmem:[%s258 + $0x30] sm:$0xff]
  %v266 = vld [vmem:[%s258 + $0x38] sm:$0xff]
  %v267 = vld [vmem:[%s258 + $0x40] sm:$0xff]
  %v268 = vld [vmem:[%s258 + $0x48] sm:$0xff]
  %v269 = vld [vmem:[%s258 + $0x50] sm:$0xff]
  %v270 = vld [vmem:[%s258 + $0x58] sm:$0xff]
  %v271 = vld [vmem:[%s258 + $0x60] sm:$0xff]
  %v272 = vld [vmem:[%s258 + $0x68] sm:$0xff]
  %v273 = vld [vmem:[%s258 + $0x70] sm:$0xff]
  %v274 = vld [vmem:[%s258 + $0x78] sm:$0xff]
  %276 = vset.pattern.permute.xlu0 0
  %277 = vperm.xlu0 %276, %v259
  %v278 = vpop.permute.xlu0 %277
  %281 = vset.pattern.permute.xlu0 0
  %282 = vperm.xlu0 %281, %v260
  %v283 = vpop.permute.xlu0 %282
  %286 = vset.pattern.permute.xlu0 0
  %287 = vperm.xlu0 %286, %v261
  %v288 = vpop.permute.xlu0 %287
  %291 = vset.pattern.permute.xlu0 0
  %292 = vperm.xlu0 %291, %v262
  %v293 = vpop.permute.xlu0 %292
  %296 = vset.pattern.permute.xlu0 0
  %297 = vperm.xlu0 %296, %v263
  %v298 = vpop.permute.xlu0 %297
  %301 = vset.pattern.permute.xlu0 0
  %302 = vperm.xlu0 %301, %v264
  %v303 = vpop.permute.xlu0 %302
  %306 = vset.pattern.permute.xlu0 0
  %307 = vperm.xlu0 %306, %v265
  %v308 = vpop.permute.xlu0 %307
  %311 = vset.pattern.permute.xlu0 0
  %312 = vperm.xlu0 %311, %v266
  %v313 = vpop.permute.xlu0 %312
  %316 = vset.pattern.permute.xlu0 0
  %317 = vperm.xlu0 %316, %v267
  %v318 = vpop.permute.xlu0 %317
  %321 = vset.pattern.permute.xlu0 0
  %322 = vperm.xlu0 %321, %v268
  %v323 = vpop.permute.xlu0 %322
  %326 = vset.pattern.permute.xlu0 0
  %327 = vperm.xlu0 %326, %v269
  %v328 = vpop.permute.xlu0 %327
  %331 = vset.pattern.permute.xlu0 0
  %332 = vperm.xlu0 %331, %v270
  %v333 = vpop.permute.xlu0 %332
  %336 = vset.pattern.permute.xlu0 0
  %337 = vperm.xlu0 %336, %v271
  %v338 = vpop.permute.xlu0 %337
  %341 = vset.pattern.permute.xlu0 0
  %342 = vperm.xlu0 %341, %v272
  %v343 = vpop.permute.xlu0 %342
  %346 = vset.pattern.permute.xlu0 0
  %347 = vperm.xlu0 %346, %v273
  %v348 = vpop.permute.xlu0 %347
  %351 = vset.pattern.permute.xlu0 0
  %352 = vperm.xlu0 %351, %v274
  %v353 = vpop.permute.xlu0 %352
  %355 = vmatpush.msra.mxu0 %v240
  %356 = vmatpush.msra.mxu0 %v239
  %357 = vmatpush.msra.mxu0 %v238
  %358 = vmatpush.msra.mxu0 %v237
  %359 = vmatpush.msra.mxu0 %v236
  %360 = vmatpush.msra.mxu0 %v235
  %361 = vmatpush.msra.mxu0 %v234
  %362 = vmatpush.msra.mxu0 %v233
  %363 = vmatpush.msra.mxu0 %v232
  %364 = vmatpush.msra.mxu0 %v231
  %365 = vmatpush.msra.mxu0 %v230
  %366 = vmatpush.msra.mxu0 %v229
  %367 = vmatpush.msra.mxu0 %v228
  %368 = vmatpush.msra.mxu0 %v227
  %369 = vmatpush.msra.mxu0 %v226
  %370 = vmatpush.msra.mxu0 %v225
  %371 = vmatmul.f32.gmra.mxu0 %v242
  %v372 = vpop.f32.mrf.mxu0
  %v373 = vadd.f32 %v278, %v372
  %374 = vmatmul.f32.gmra.mxu0 %v243
  %v375 = vpop.f32.mrf.mxu0
  %v376 = vadd.f32 %v283, %v375
  %377 = vmatmul.f32.gmra.mxu0 %v244
  %v378 = vpop.f32.mrf.mxu0
  %v379 = vadd.f32 %v288, %v378
  %380 = vmatmul.f32.gmra.mxu0 %v245
  %v381 = vpop.f32.mrf.mxu0
  %v382 = vadd.f32 %v293, %v381
  %383 = vmatmul.f32.gmra.mxu0 %v246
  %v384 = vpop.f32.mrf.mxu0
  %v385 = vadd.f32 %v298, %v384
  %386 = vmatmul.f32.gmra.mxu0 %v247
  %v387 = vpop.f32.mrf.mxu0
  %v388 = vadd.f32 %v303, %v387
  %389 = vmatmul.f32.gmra.mxu0 %v248
  %v390 = vpop.f32.mrf.mxu0
  %v391 = vadd.f32 %v308, %v390
  %392 = vmatmul.f32.gmra.mxu0 %v249
  %v393 = vpop.f32.mrf.mxu0
  %v394 = vadd.f32 %v313, %v393
  %395 = vmatmul.f32.gmra.mxu0 %v250
  %v396 = vpop.f32.mrf.mxu0
  %v397 = vadd.f32 %v318, %v396
  %398 = vmatmul.f32.gmra.mxu0 %v251
  %v399 = vpop.f32.mrf.mxu0
  %v400 = vadd.f32 %v323, %v399
  %401 = vmatmul.f32.gmra.mxu0 %v252
  %v402 = vpop.f32.mrf.mxu0
  %v403 = vadd.f32 %v328, %v402
  %404 = vmatmul.f32.gmra.mxu0 %v253
  %v405 = vpop.f32.mrf.mxu0
  %v406 = vadd.f32 %v333, %v405
  %407 = vmatmul.f32.gmra.mxu0 %v254
  %v408 = vpop.f32.mrf.mxu0
  %v409 = vadd.f32 %v338, %v408
  %410 = vmatmul.f32.gmra.mxu0 %v255
  %v411 = vpop.f32.mrf.mxu0
  %v412 = vadd.f32 %v343, %v411
  %413 = vmatmul.f32.gmra.mxu0 %v256
  %v414 = vpop.f32.mrf.mxu0
  %v415 = vadd.f32 %v348, %v414
  %416 = vmatmul.f32.gmra.mxu0 %v257
  %v417 = vpop.f32.mrf.mxu0
  %v418 = vadd.f32 %v353, %v417
  %419 = vdwg.mxu0
  %v420 = vmax.f32 %v373, 0.0
  %v421 = vmax.f32 %v376, 0.0
  %v422 = vmax.f32 %v379, 0.0
  %v423 = vmax.f32 %v382, 0.0
  %v424 = vmax.f32 %v385, 0.0
  %v425 = vmax.f32 %v388, 0.0
  %v426 = vmax.f32 %v391, 0.0
  %v427 = vmax.f32 %v394, 0.0
  %v428 = vmax.f32 %v397, 0.0
  %v429 = vmax.f32 %v400, 0.0
  %v430 = vmax.f32 %v403, 0.0
  %v431 = vmax.f32 %v406, 0.0
  %v432 = vmax.f32 %v409, 0.0
  %v433 = vmax.f32 %v412, 0.0
  %v434 = vmax.f32 %v415, 0.0
  %v435 = vmax.f32 %v418, 0.0
  %s436 = scalar_lea.vmem %s1, 256
  %v437 = vld [vmem:[%s436] sm:$0xff]
  %v438 = vld [vmem:[%s436 + $0x8] sm:$0xff]
  %v439 = vld [vmem:[%s436 + $0x10] sm:$0xff]
  %v440 = vld [vmem:[%s436 + $0x18] sm:$0xff]
  %v441 = vld [vmem:[%s436 + $0x20] sm:$0xff]
  %v442 = vld [vmem:[%s436 + $0x28] sm:$0xff]
  %v443 = vld [vmem:[%s436 + $0x30] sm:$0xff]
  %v444 = vld [vmem:[%s436 + $0x38] sm:$0xff]
  %v445 = vld [vmem:[%s436 + $0x40] sm:$0xff]
  %v446 = vld [vmem:[%s436 + $0x48] sm:$0xff]
  %v447 = vld [vmem:[%s436 + $0x50] sm:$0xff]
  %v448 = vld [vmem:[%s436 + $0x58] sm:$0xff]
  %v449 = vld [vmem:[%s436 + $0x60] sm:$0xff]
  %v450 = vld [vmem:[%s436 + $0x68] sm:$0xff]
  %v451 = vld [vmem:[%s436 + $0x70] sm:$0xff]
  %v452 = vld [vmem:[%s436 + $0x78] sm:$0xff]
  %s453 = scalar_lea.vmem %s2, 256
  %v454 = vld [vmem:[%s453] sm:$0xff]
  %v455 = vld [vmem:[%s453 + $0x8] sm:$0xff]
  %v456 = vld [vmem:[%s453 + $0x10] sm:$0xff]
  %v457 = vld [vmem:[%s453 + $0x18] sm:$0xff]
  %v458 = vld [vmem:[%s453 + $0x20] sm:$0xff]
  %v459 = vld [vmem:[%s453 + $0x28] sm:$0xff]
  %v460 = vld [vmem:[%s453 + $0x30] sm:$0xff]
  %v461 = vld [vmem:[%s453 + $0x38] sm:$0xff]
  %v462 = vld [vmem:[%s453 + $0x40] sm:$0xff]
  %v463 = vld [vmem:[%s453 + $0x48] sm:$0xff]
  %v464 = vld [vmem:[%s453 + $0x50] sm:$0xff]
  %v465 = vld [vmem:[%s453 + $0x58] sm:$0xff]
  %v466 = vld [vmem:[%s453 + $0x60] sm:$0xff]
  %v467 = vld [vmem:[%s453 + $0x68] sm:$0xff]
  %v468 = vld [vmem:[%s453 + $0x70] sm:$0xff]
  %v469 = vld [vmem:[%s453 + $0x78] sm:$0xff]
  %471 = vset.pattern.permute.xlu0 0
  %472 = vperm.xlu0 %471, %v454
  %v473 = vpop.permute.xlu0 %472
  %476 = vset.pattern.permute.xlu0 0
  %477 = vperm.xlu0 %476, %v455
  %v478 = vpop.permute.xlu0 %477
  %480 = vset.pattern.permute.xlu0 0
  %481 = vperm.xlu0 %480, %v456
  %v482 = vpop.permute.xlu0 %481
  %484 = vset.pattern.permute.xlu0 0
  %485 = vperm.xlu0 %484, %v457
  %v486 = vpop.permute.xlu0 %485
  %488 = vset.pattern.permute.xlu0 0
  %489 = vperm.xlu0 %488, %v458
  %v490 = vpop.permute.xlu0 %489
  %492 = vset.pattern.permute.xlu0 0
  %493 = vperm.xlu0 %492, %v459
  %v494 = vpop.permute.xlu0 %493
  %496 = vset.pattern.permute.xlu0 0
  %497 = vperm.xlu0 %496, %v460
  %v498 = vpop.permute.xlu0 %497
  %500 = vset.pattern.permute.xlu0 0
  %501 = vperm.xlu0 %500, %v461
  %v502 = vpop.permute.xlu0 %501
  %504 = vset.pattern.permute.xlu0 0
  %505 = vperm.xlu0 %504, %v462
  %v506 = vpop.permute.xlu0 %505
  %508 = vset.pattern.permute.xlu0 0
  %509 = vperm.xlu0 %508, %v463
  %v510 = vpop.permute.xlu0 %509
  %512 = vset.pattern.permute.xlu0 0
  %513 = vperm.xlu0 %512, %v464
  %v514 = vpop.permute.xlu0 %513
  %516 = vset.pattern.permute.xlu0 0
  %517 = vperm.xlu0 %516, %v465
  %v518 = vpop.permute.xlu0 %517
  %520 = vset.pattern.permute.xlu0 0
  %521 = vperm.xlu0 %520, %v466
  %v522 = vpop.permute.xlu0 %521
  %524 = vset.pattern.permute.xlu0 0
  %525 = vperm.xlu0 %524, %v467
  %v526 = vpop.permute.xlu0 %525
  %528 = vset.pattern.permute.xlu0 0
  %529 = vperm.xlu0 %528, %v468
  %v530 = vpop.permute.xlu0 %529
  %532 = vset.pattern.permute.xlu0 0
  %533 = vperm.xlu0 %532, %v469
  %v534 = vpop.permute.xlu0 %533
  %535 = vmatpush.msra.mxu0 %v435
  %536 = vmatpush.msra.mxu0 %v434
  %537 = vmatpush.msra.mxu0 %v433
  %538 = vmatpush.msra.mxu0 %v432
  %539 = vmatpush.msra.mxu0 %v431
  %540 = vmatpush.msra.mxu0 %v430
  %541 = vmatpush.msra.mxu0 %v429
  %542 = vmatpush.msra.mxu0 %v428
  %543 = vmatpush.msra.mxu0 %v427
  %544 = vmatpush.msra.mxu0 %v426
  %545 = vmatpush.msra.mxu0 %v425
  %546 = vmatpush.msra.mxu0 %v424
  %547 = vmatpush.msra.mxu0 %v423
  %548 = vmatpush.msra.mxu0 %v422
  %549 = vmatpush.msra.mxu0 %v421
  %550 = vmatpush.msra.mxu0 %v420
  %551 = vmatmul.f32.gmra.mxu0 %v437
  %v552 = vpop.f32.mrf.mxu0
  %v553 = vadd.f32 %v473, %v552
  %554 = vmatmul.f32.gmra.mxu0 %v438
  %v555 = vpop.f32.mrf.mxu0
  %556 = vmatmul.f32.gmra.mxu0 %v439
  %v557 = vpop.f32.mrf.mxu0
  %558 = vmatmul.f32.gmra.mxu0 %v440
  %v559 = vpop.f32.mrf.mxu0
  %560 = vmatmul.f32.gmra.mxu0 %v441
  %v561 = vpop.f32.mrf.mxu0
  %562 = vmatmul.f32.gmra.mxu0 %v442
  %v563 = vpop.f32.mrf.mxu0
  %564 = vmatmul.f32.gmra.mxu0 %v443
  %v565 = vpop.f32.mrf.mxu0
  %566 = vmatmul.f32.gmra.mxu0 %v444
  %v567 = vpop.f32.mrf.mxu0
  %568 = vmatmul.f32.gmra.mxu0 %v445
  %v569 = vpop.f32.mrf.mxu0
  %570 = vmatmul.f32.gmra.mxu0 %v446
  %v571 = vpop.f32.mrf.mxu0
  %572 = vmatmul.f32.gmra.mxu0 %v447
  %v573 = vpop.f32.mrf.mxu0
  %574 = vmatmul.f32.gmra.mxu0 %v448
  %v575 = vpop.f32.mrf.mxu0
  %576 = vmatmul.f32.gmra.mxu0 %v449
  %v577 = vpop.f32.mrf.mxu0
  %578 = vmatmul.f32.gmra.mxu0 %v450
  %v579 = vpop.f32.mrf.mxu0
  %580 = vmatmul.f32.gmra.mxu0 %v451
  %v581 = vpop.f32.mrf.mxu0
  %582 = vmatmul.f32.gmra.mxu0 %v452
  %v583 = vpop.f32.mrf.mxu0
  %584 = vdwg.mxu0
  %v585 = vsub.f32 0.0, %v553
  %v586 = vmul.f32 %v585, 1.442695
  %v587 = vpow.pop %v586
  %v588 = vadd.f32 %v587, 1.0
  %v589 = vrcp.pop %v588
  %v590 = vmul.f32 %v588, %v589
  %v591 = vsub.f32 1.0, %v590
  %v592 = vmul.f32 %v589, %v591
  %v593 = vadd.f32 %v589, %v592
  %vm594 = vweird.f32 %v588
  %vm595 = vweird.f32 %v589
  %vm596 = vmor %vm594, %vm595
  %v597 = vsel %vm596, %v589, %v593
  %v598 = vand.u32 2147483647, %v588
  %vm599 = vcmp.eq.f32.partialorder %v598, 8.507059e+37
  %v600 = vand.u32 %v588, 2147483648
  %v601 = vor.u32 1.1754944e-38, %v600
  %v602 = vsel %vm599, %v601, %v597
  %v603 = vmul.f32 1.0, %v602
  %604 = vst [vmem:[%s3] sm:$0x7] %v603
  // Predicated region
  $region14: #{model2_forward.1} parent=0 // pred_check
    _
  $region15: #{model2_forward.1} parent=0 // pred_check_branch
    %606 = sbr.rel (0) target = $region17
  $region16: #{model2_forward.1} parent=0 // pred_region
    _
  $region17: #{model2_forward.1} parent=0 // pred_fallthru
    _
  // Predicated region
  $region18: #{model2_forward.1} parent=0 // pred_check
    _
  $region19: #{model2_forward.1} parent=0 // pred_check_branch
    %608 = sbr.rel (0) target = $region21
  $region20: #{model2_forward.1} parent=0 // pred_region
    _
  $region21: #{model2_forward.1} parent=0 // pred_fallthru
    _

</llo_original>
